<compile_context>
chip_gen: v7x
topology: tpu7x:2x2x1
jax: 0.10.0
libtpu: 0.0.40
codegen_flags: <defaults>
</compile_context>

<pallas_src>
import math
from functools import partial

import jax
import jax.numpy as jnp
from jax.experimental import pallas as pl
from jax.experimental.pallas import tpu as pltpu

N_CHANNELS = 128         # module default is 256; 128 keeps the test small while
                         # staying lane-dense (every dim a multiple of 128 lanes)
HALF_DIM = N_CHANNELS // 2
HIDDEN = N_CHANNELS * 2
LN_EPS = 1e-5


def _round_up(x, m):
    return -(-x // m) * m


def _layernorm(h, gamma, beta):
    # E[h^2] - mu^2: the two cross-lane reductions are independent and can
    # overlap on the XLU (vs. the serial centered form).  Clamp at 0: the
    # subtraction can cancel to a tiny negative in f32.
    mu = jnp.mean(h, axis=-1, keepdims=True)
    ms = jnp.mean(h * h, axis=-1, keepdims=True)
    var = jnp.maximum(ms - mu * mu, 0.0)
    return (h - mu) * jax.lax.rsqrt(var + LN_EPS) * gamma + beta


def _silu(h, tanh_dtype):
    # silu(x) = x*sigmoid(x) == 0.5*x*(1 + tanh(x/2)): one EUP push (tanh)
    # instead of exp + divide.  The tanh runs in bf16 on v6e/v7x (bf16 EUP)
    # and f32 on v5e; the surrounding VALU math and LN stats stay f32.
    th = jnp.tanh((0.5 * h).astype(tanh_dtype)).astype(jnp.float32)
    return 0.5 * h * (1.0 + th)


def time_embedding_kernel(t_ref, vc_ref, vh_ref, w1_ref, w2_ref, o_ref, *,
                          tanh_dtype):
    # t_ref : (TB, 1)      f32 timesteps (one batch block)
    # vc_ref: (8, C)       f32 packed rows [freq2, phase, b2, gamma2, beta2, pad]
    # vh_ref: (8, 2C)      f32 packed rows [b1, gamma1, beta1, pad]
    # w1_ref: (C, 2C)      bf16 spectral-normalized lin1 weight, pre-transposed
    # w2_ref: (2C, C)      bf16 spectral-normalized lin2 weight, pre-transposed
    freq2 = vc_ref[0:1, :]
    phase = vc_ref[1:2, :]
    b2 = vc_ref[2:3, :]
    g2 = vc_ref[3:4, :]
    be2 = vc_ref[4:5, :]
    b1 = vh_ref[0:1, :]
    g1 = vh_ref[1:2, :]
    be1 = vh_ref[2:3, :]

    # --- sinusoidal embedding in ONE transcendental --------------------------
    # [sin(t*f), cos(t*f)] == sin(t*[f,f] + [0, pi/2])  (no exp/cos/concat here)
    emb = jnp.sin(t_ref[...] * freq2 + phase)                       # (TB, C) f32

    # --- lin1 (bf16 MXU, f32 acc) -> LayerNorm -> SiLU -> dropout (identity) -
    h = jnp.dot(emb.astype(jnp.bfloat16), w1_ref[...],
                preferred_element_type=jnp.float32) + b1            # (TB, 2C)
    h = _silu(_layernorm(h, g1, be1), tanh_dtype)

    # --- lin2 (bf16 MXU, f32 acc) -> LayerNorm -> SiLU -> dropout (identity) -
    h = jnp.dot(h.astype(jnp.bfloat16), w2_ref[...],
                preferred_element_type=jnp.float32) + b2            # (TB, C)
    h = _silu(_layernorm(h, g2, be2), tanh_dtype)

    o_ref[...] = h.astype(o_ref.dtype)


def init_params(key):
    """Deterministic parameter init matching the module's shapes.

    lin1: (2C, C) weight, (2C,) bias   -- spectral-normalized
    lin2: (C, 2C) weight, (C,) bias    -- spectral-normalized
    norm1/norm2: LayerNorm affine (gamma=1, beta=0, torch default init)
    """
    k1, k2, k3, k4 = jax.random.split(key, 4)

    def lin_init(kw, kb, fan_in, fan_out):
        bound = 1.0 / math.sqrt(fan_in)
        w = jax.random.uniform(kw, (fan_out, fan_in), jnp.float32, -bound, bound)
        b = jax.random.uniform(kb, (fan_out,), jnp.float32, -bound, bound)
        return w, b

    w1, b1 = lin_init(k1, k2, N_CHANNELS, HIDDEN)
    w2, b2 = lin_init(k3, k4, HIDDEN, N_CHANNELS)

    # spectral_norm: divide weight by its largest singular value.
    w1 = w1 / jnp.linalg.svd(w1, compute_uv=False)[0]
    w2 = w2 / jnp.linalg.svd(w2, compute_uv=False)[0]

    # Precomputed sinusoidal frequency table with the cos->sin phase fold.
    scale = math.log(10000.0) / (HALF_DIM - 1)
    freq = jnp.exp(jnp.arange(HALF_DIM, dtype=jnp.float32) * (-scale))
    freq2 = jnp.concatenate([freq, freq])                          # (C,)
    phase = jnp.concatenate([jnp.zeros((HALF_DIM,), jnp.float32),
                             jnp.full((HALF_DIM,), math.pi / 2, jnp.float32)])

    # Pack the small per-lane vectors into two arrays (padded to 8 sublanes).
    vecs_c = jnp.zeros((8, N_CHANNELS), jnp.float32).at[:5].set(
        jnp.stack([freq2, phase, b2,
                   jnp.ones((N_CHANNELS,), jnp.float32),
                   jnp.zeros((N_CHANNELS,), jnp.float32)]))
    vecs_h = jnp.zeros((8, HIDDEN), jnp.float32).at[:3].set(
        jnp.stack([b1,
                   jnp.ones((HIDDEN,), jnp.float32),
                   jnp.zeros((HIDDEN,), jnp.float32)]))

    return dict(
        vecs_c=vecs_c,                          # (8, C):  freq2, phase, b2, g2, be2
        vecs_h=vecs_h,                          # (8, 2C): b1, g1, be1
        w1t=w1.T.astype(jnp.bfloat16),          # (C, 2C)  bf16 for the MXU
        w2t=w2.T.astype(jnp.bfloat16),          # (2C, C)
    )


def _tanh_dtype():
    # bf16 EUP exists on v6e / v7x; v5e (and older) has no bf16 VPU/EUP, so it
    # keeps the f32 path.  Unknown device kinds fall back to f32 (always safe).
    try:
        kind = jax.devices()[0].device_kind.lower()
    except Exception:
        return jnp.float32
    return jnp.bfloat16 if ("v6" in kind or "v7" in kind) else jnp.float32


def time_embedding(t, params, *, block_b=2048):
    B = t.shape[0]
    Bp8 = _round_up(B, 8)
    # Batch block: at least two grid blocks whenever there is more than one
    # sublane-row of work, so ("parallel",) can shard across v7x's two
    # TensorCores; cap at block_b (sweepable -- activations + tiles stay a few
    # MiB even at TB=4096, far under any chip's VMEM).
    tb_target = _round_up(pl.cdiv(Bp8, 2), 8) if Bp8 > 8 else Bp8
    TB = min(block_b, tb_target)
    Bp = _round_up(Bp8, TB)                     # pad batch to a multiple of TB
    t_pad = jnp.pad(t.astype(jnp.float32), (0, Bp - B)).reshape(Bp, 1)

    flops = 2 * Bp * (N_CHANNELS * HIDDEN + HIDDEN * N_CHANNELS)
    transc = Bp * (N_CHANNELS + HIDDEN + N_CHANNELS + 2)   # sin + tanhs + rsqrts
    bytes_acc = (params["w1t"].size + params["w2t"].size) * 2 \
        + (params["vecs_c"].size + params["vecs_h"].size) * 4 \
        + Bp * 4 + Bp * N_CHANNELS * 4

    kernel = partial(time_embedding_kernel, tanh_dtype=_tanh_dtype())

    out = pl.pallas_call(
        kernel,
        out_shape=jax.ShapeDtypeStruct((Bp, N_CHANNELS), jnp.float32),
        grid=(Bp // TB,),
        in_specs=[
            pl.BlockSpec((TB, 1), lambda i: (i, 0)),               # t block
            pl.BlockSpec((8, N_CHANNELS), lambda i: (0, 0)),       # packed C-vecs
            pl.BlockSpec((8, HIDDEN), lambda i: (0, 0)),           # packed 2C-vecs
            pl.BlockSpec((N_CHANNELS, HIDDEN), lambda i: (0, 0)),  # w1 (resident)
            pl.BlockSpec((HIDDEN, N_CHANNELS), lambda i: (0, 0)),  # w2 (resident)
        ],
        out_specs=pl.BlockSpec((TB, N_CHANNELS), lambda i: (i, 0)),
        compiler_params=pltpu.CompilerParams(
            dimension_semantics=("parallel",)),
        cost_estimate=pl.CostEstimate(
            flops=flops, transcendentals=transc, bytes_accessed=bytes_acc),
    )(t_pad, params["vecs_c"], params["vecs_h"], params["w1t"], params["w2t"])
    return out[:B]


if __name__ == "__main__":
    key = jax.random.PRNGKey(0)
    kp, kt = jax.random.split(key)
    params = init_params(kp)

    B = 8
    # timesteps, e.g. diffusion steps in [0, 1000)
    t = jax.random.uniform(kt, (B,), jnp.float32, 0.0, 1000.0)

    out = time_embedding(t, params)
    out = jax.block_until_ready(out)
    assert out.shape == (B, N_CHANNELS) and out.dtype == jnp.float32
    assert bool(jnp.all(jnp.isfinite(out)))
    print("KERNEL_OK")
</pallas_src>

<mosaic_0001>
module attributes {stable_mosaic.version = 11 : i64} {
  func.func @time_embedding_kernel(%arg0: i32, %arg1: memref<8x1xf32, #tpu.memory_space<vmem>>, %arg2: memref<8x128xf32, #tpu.memory_space<vmem>>, %arg3: memref<8x256xf32, #tpu.memory_space<vmem>>, %arg4: memref<128x256xbf16, #tpu.memory_space<vmem>>, %arg5: memref<256x128xbf16, #tpu.memory_space<vmem>>, %arg6: memref<8x128xf32, #tpu.memory_space<vmem>>) attributes {dimension_semantics = [#tpu.dimension_semantics<parallel>], iteration_bounds = array<i64: 1>, scalar_prefetch = 0 : i64, scratch_operands = 0 : i64, tpu.core_type = #tpu.core_type<tc>, window_params = [{transform_indices = @transform_0, window_bounds = array<i64: 8, 1>}, {pipeline_mode = #tpu.pipeline_mode<synchronous>, transform_indices = @transform_1, window_bounds = array<i64: 8, 128>}, {pipeline_mode = #tpu.pipeline_mode<synchronous>, transform_indices = @transform_2, window_bounds = array<i64: 8, 256>}, {pipeline_mode = #tpu.pipeline_mode<synchronous>, transform_indices = @transform_3, window_bounds = array<i64: 128, 256>}, {pipeline_mode = #tpu.pipeline_mode<synchronous>, transform_indices = @transform_4, window_bounds = array<i64: 256, 128>}, {transform_indices = @transform_5, window_bounds = array<i64: 8, 128>}]} {
    %c0 = arith.constant 0 : index
    %c0_0 = arith.constant 0 : index
    %0 = vector.load %arg2[%c0, %c0_0] : memref<8x128xf32, #tpu.memory_space<vmem>>, vector<1x128xf32>
    %c1 = arith.constant 1 : index
    %c0_1 = arith.constant 0 : index
    %1 = vector.load %arg2[%c1, %c0_1] : memref<8x128xf32, #tpu.memory_space<vmem>>, vector<1x128xf32>
    %c2 = arith.constant 2 : index
    %c0_2 = arith.constant 0 : index
    %2 = vector.load %arg2[%c2, %c0_2] : memref<8x128xf32, #tpu.memory_space<vmem>>, vector<1x128xf32>
    %c3 = arith.constant 3 : index
    %c0_3 = arith.constant 0 : index
    %3 = vector.load %arg2[%c3, %c0_3] : memref<8x128xf32, #tpu.memory_space<vmem>>, vector<1x128xf32>
    %c4 = arith.constant 4 : index
    %c0_4 = arith.constant 0 : index
    %4 = vector.load %arg2[%c4, %c0_4] : memref<8x128xf32, #tpu.memory_space<vmem>>, vector<1x128xf32>
    %c0_5 = arith.constant 0 : index
    %c0_6 = arith.constant 0 : index
    %5 = vector.load %arg3[%c0_5, %c0_6] : memref<8x256xf32, #tpu.memory_space<vmem>>, vector<1x256xf32>
    %c1_7 = arith.constant 1 : index
    %c0_8 = arith.constant 0 : index
    %6 = vector.load %arg3[%c1_7, %c0_8] : memref<8x256xf32, #tpu.memory_space<vmem>>, vector<1x256xf32>
    %c2_9 = arith.constant 2 : index
    %c0_10 = arith.constant 0 : index
    %7 = vector.load %arg3[%c2_9, %c0_10] : memref<8x256xf32, #tpu.memory_space<vmem>>, vector<1x256xf32>
    %c0_11 = arith.constant 0 : index
    %c0_12 = arith.constant 0 : index
    %8 = vector.load %arg1[%c0_11, %c0_12] : memref<8x1xf32, #tpu.memory_space<vmem>>, vector<8x1xf32>
    %9 = vector.broadcast %8 : vector<8x1xf32> to vector<8x128xf32>
    %10 = vector.broadcast %0 : vector<1x128xf32> to vector<8x128xf32>
    %11 = arith.mulf %9, %10 : vector<8x128xf32>
    %12 = vector.broadcast %1 : vector<1x128xf32> to vector<8x128xf32>
    %13 = arith.addf %11, %12 : vector<8x128xf32>
    %14 = math.sin %13 : vector<8x128xf32>
    %15 = arith.truncf %14 : vector<8x128xf32> to vector<8x128xbf16>
    %c0_13 = arith.constant 0 : index
    %c0_14 = arith.constant 0 : index
    %16 = vector.load %arg4[%c0_13, %c0_14] : memref<128x256xbf16, #tpu.memory_space<vmem>>, vector<128x256xbf16>
    %cst = arith.constant dense<0.000000e+00> : vector<8x256xf32>
    %17 = tpu.matmul %15, %16, %cst {dimension_numbers = #tpu.dot_dimension_numbers<[1], [0], [0], [1], [0, 0, 1, 1], [], []>} : vector<8x128xbf16>, vector<128x256xbf16>, vector<8x256xf32> -> vector<8x256xf32>
    %18 = vector.broadcast %5 : vector<1x256xf32> to vector<8x256xf32>
    %19 = arith.addf %17, %18 : vector<8x256xf32>
    %cst_15 = arith.constant dense<0.000000e+00> : vector<8xf32>
    %20 = vector.multi_reduction <add>, %19, %cst_15 [1] : vector<8x256xf32> to vector<8xf32>
    %21 = vector.shape_cast %20 : vector<8xf32> to vector<8x1xf32>
    %cst_16 = arith.constant 2.560000e+02 : f32
    %22 = vector.broadcast %cst_16 : f32 to vector<8x1xf32>
    %23 = arith.divf %21, %22 : vector<8x1xf32>
    %24 = arith.mulf %19, %19 : vector<8x256xf32>
    %cst_17 = arith.constant dense<0.000000e+00> : vector<8xf32>
    %25 = vector.multi_reduction <add>, %24, %cst_17 [1] : vector<8x256xf32> to vector<8xf32>
    %26 = vector.shape_cast %25 : vector<8xf32> to vector<8x1xf32>
    %cst_18 = arith.constant 2.560000e+02 : f32
    %27 = vector.broadcast %cst_18 : f32 to vector<8x1xf32>
    %28 = arith.divf %26, %27 : vector<8x1xf32>
    %29 = arith.mulf %23, %23 : vector<8x1xf32>
    %30 = arith.subf %28, %29 : vector<8x1xf32>
    %cst_19 = arith.constant 0.000000e+00 : f32
    %31 = vector.broadcast %cst_19 : f32 to vector<8x1xf32>
    %32 = arith.maximumf %30, %31 : vector<8x1xf32>
    %33 = vector.broadcast %23 : vector<8x1xf32> to vector<8x256xf32>
    %34 = arith.subf %19, %33 : vector<8x256xf32>
    %cst_20 = arith.constant 9.99999974E-6 : f32
    %35 = vector.broadcast %cst_20 : f32 to vector<8x1xf32>
    %36 = arith.addf %32, %35 : vector<8x1xf32>
    %37 = math.rsqrt %36 : vector<8x1xf32>
    %38 = vector.broadcast %37 : vector<8x1xf32> to vector<8x256xf32>
    %39 = arith.mulf %34, %38 : vector<8x256xf32>
    %40 = vector.broadcast %6 : vector<1x256xf32> to vector<8x256xf32>
    %41 = arith.mulf %39, %40 : vector<8x256xf32>
    %42 = vector.broadcast %7 : vector<1x256xf32> to vector<8x256xf32>
    %43 = arith.addf %41, %42 : vector<8x256xf32>
    %cst_21 = arith.constant 5.000000e-01 : f32
    %44 = vector.broadcast %cst_21 : f32 to vector<8x256xf32>
    %45 = arith.mulf %44, %43 : vector<8x256xf32>
    %46 = math.tanh %45 : vector<8x256xf32>
    %cst_22 = arith.constant 5.000000e-01 : f32
    %47 = vector.broadcast %cst_22 : f32 to vector<8x256xf32>
    %48 = arith.mulf %47, %43 : vector<8x256xf32>
    %cst_23 = arith.constant 1.000000e+00 : f32
    %49 = vector.broadcast %cst_23 : f32 to vector<8x256xf32>
    %50 = arith.addf %49, %46 : vector<8x256xf32>
    %51 = arith.mulf %48, %50 : vector<8x256xf32>
    %52 = arith.truncf %51 : vector<8x256xf32> to vector<8x256xbf16>
    %c0_24 = arith.constant 0 : index
    %c0_25 = arith.constant 0 : index
    %53 = vector.load %arg5[%c0_24, %c0_25] : memref<256x128xbf16, #tpu.memory_space<vmem>>, vector<256x128xbf16>
    %cst_26 = arith.constant dense<0.000000e+00> : vector<8x128xf32>
    %54 = tpu.matmul %52, %53, %cst_26 {dimension_numbers = #tpu.dot_dimension_numbers<[1], [0], [0], [1], [0, 0, 1, 1], [], []>} : vector<8x256xbf16>, vector<256x128xbf16>, vector<8x128xf32> -> vector<8x128xf32>
    %55 = vector.broadcast %2 : vector<1x128xf32> to vector<8x128xf32>
    %56 = arith.addf %54, %55 : vector<8x128xf32>
    %cst_27 = arith.constant dense<0.000000e+00> : vector<8xf32>
    %57 = vector.multi_reduction <add>, %56, %cst_27 [1] : vector<8x128xf32> to vector<8xf32>
    %58 = vector.shape_cast %57 : vector<8xf32> to vector<8x1xf32>
    %cst_28 = arith.constant 1.280000e+02 : f32
    %59 = vector.broadcast %cst_28 : f32 to vector<8x1xf32>
    %60 = arith.divf %58, %59 : vector<8x1xf32>
    %61 = arith.mulf %56, %56 : vector<8x128xf32>
    %cst_29 = arith.constant dense<0.000000e+00> : vector<8xf32>
    %62 = vector.multi_reduction <add>, %61, %cst_29 [1] : vector<8x128xf32> to vector<8xf32>
    %63 = vector.shape_cast %62 : vector<8xf32> to vector<8x1xf32>
    %cst_30 = arith.constant 1.280000e+02 : f32
    %64 = vector.broadcast %cst_30 : f32 to vector<8x1xf32>
    %65 = arith.divf %63, %64 : vector<8x1xf32>
    %66 = arith.mulf %60, %60 : vector<8x1xf32>
    %67 = arith.subf %65, %66 : vector<8x1xf32>
    %cst_31 = arith.constant 0.000000e+00 : f32
    %68 = vector.broadcast %cst_31 : f32 to vector<8x1xf32>
    %69 = arith.maximumf %67, %68 : vector<8x1xf32>
    %70 = vector.broadcast %60 : vector<8x1xf32> to vector<8x128xf32>
    %71 = arith.subf %56, %70 : vector<8x128xf32>
    %cst_32 = arith.constant 9.99999974E-6 : f32
    %72 = vector.broadcast %cst_32 : f32 to vector<8x1xf32>
    %73 = arith.addf %69, %72 : vector<8x1xf32>
    %74 = math.rsqrt %73 : vector<8x1xf32>
    %75 = vector.broadcast %74 : vector<8x1xf32> to vector<8x128xf32>
    %76 = arith.mulf %71, %75 : vector<8x128xf32>
    %77 = vector.broadcast %3 : vector<1x128xf32> to vector<8x128xf32>
    %78 = arith.mulf %76, %77 : vector<8x128xf32>
    %79 = vector.broadcast %4 : vector<1x128xf32> to vector<8x128xf32>
    %80 = arith.addf %78, %79 : vector<8x128xf32>
    %cst_33 = arith.constant 5.000000e-01 : f32
    %81 = vector.broadcast %cst_33 : f32 to vector<8x128xf32>
    %82 = arith.mulf %81, %80 : vector<8x128xf32>
    %83 = math.tanh %82 : vector<8x128xf32>
    %cst_34 = arith.constant 5.000000e-01 : f32
    %84 = vector.broadcast %cst_34 : f32 to vector<8x128xf32>
    %85 = arith.mulf %84, %80 : vector<8x128xf32>
    %cst_35 = arith.constant 1.000000e+00 : f32
    %86 = vector.broadcast %cst_35 : f32 to vector<8x128xf32>
    %87 = arith.addf %86, %83 : vector<8x128xf32>
    %88 = arith.mulf %85, %87 : vector<8x128xf32>
    %c0_36 = arith.constant 0 : index
    %c0_37 = arith.constant 0 : index
    %89 = vector.load %arg6[%c0_36, %c0_37] : memref<8x128xf32, #tpu.memory_space<vmem>>, vector<8x128xf32>
    tpu.vector_store %arg6[%c0_36, %c0_37], %88 {strides = array<i32>} : memref<8x128xf32, #tpu.memory_space<vmem>>, vector<8x128xf32>,
    return
  }
  func.func @transform_0(%arg0: i32) -> (i32, i32) {
    %c0_i32 = arith.constant 0 : i32
    %c0_i32_0 = arith.constant 0 : i32
    return %arg0, %c0_i32 : i32, i32
  }
  func.func @transform_1(%arg0: i32) -> (i32, i32) {
    %c0_i32 = arith.constant 0 : i32
    %c0_i32_0 = arith.constant 0 : i32
    %c0_i32_1 = arith.constant 0 : i32
    return %c0_i32, %c0_i32_0 : i32, i32
  }
  func.func @transform_2(%arg0: i32) -> (i32, i32) {
    %c0_i32 = arith.constant 0 : i32
    %c0_i32_0 = arith.constant 0 : i32
    %c0_i32_1 = arith.constant 0 : i32
    return %c0_i32, %c0_i32_0 : i32, i32
  }
  func.func @transform_3(%arg0: i32) -> (i32, i32) {
    %c0_i32 = arith.constant 0 : i32
    %c0_i32_0 = arith.constant 0 : i32
    %c0_i32_1 = arith.constant 0 : i32
    return %c0_i32, %c0_i32_0 : i32, i32
  }
  func.func @transform_4(%arg0: i32) -> (i32, i32) {
    %c0_i32 = arith.constant 0 : i32
    %c0_i32_0 = arith.constant 0 : i32
    %c0_i32_1 = arith.constant 0 : i32
    return %c0_i32, %c0_i32_0 : i32, i32
  }
  func.func @transform_5(%arg0: i32) -> (i32, i32) {
    %c0_i32 = arith.constant 0 : i32
    %c0_i32_0 = arith.constant 0 : i32
    return %arg0, %c0_i32 : i32, i32
  }
}

</mosaic_0001>

<llo_original>
// kernel: tpu_custom_call.1
$region0: #{tpu_custom_call.1}
  #allocation0 [shape = 'u32[]', space=smem, size = 0x4, offset = 0x4, fixed_abs, tag = 'smem constant byte address 0x4 - core index']
  #allocation1 [shape = 'u32[144,128]{1,0:T(1,128)}', space=vmem, size = 0x12000, scoped, tag = 'internal scratch']
  %s0 = inlined_call_operand.vmem [shape: f32[8,1], index: 0, kind: input, shape index: {}]
  %s1 = inlined_call_operand.hbm [shape: f32[8,128], index: 1, kind: input, shape index: {}]
  %s2 = inlined_call_operand.vmem [shape: f32[8,256], index: 2, kind: input, shape index: {}]
  %s3 = inlined_call_operand.hbm [shape: bf16[128,256], index: 3, kind: input, shape index: {}]
  %s4 = inlined_call_operand.hbm [shape: bf16[256,128], index: 4, kind: input, shape index: {}]
  %s5 = inlined_call_operand.hbm [shape: f32[8,128], index: 5, kind: output, shape index: {}]
  %s6 = sld [smem:[#allocation0]]
  $region42: #{tpu_custom_call.1} parent=0
    _
  %s8 = ssub.s32 1, %s6
  %s9 = scalar_select 0, %s8, %s6
  $region1: #{tpu_custom_call.1} parent=0
    #allocation2 [shape = 'u8[4096]{0}', space=vmem, size = 0x1000, scoped, tag = 'input window, operand 1, single buffered']
    #allocation3 [shape = 's32[1]{0}', space=sflag, size = 0x4, scoped, tag = 'scoped memory for tpu_custom_call.1']
    #allocation4 [shape = 's32[1]{0}', space=sflag, size = 0x4, scoped, tag = 'scoped memory for tpu_custom_call.1']
    #allocation5 [shape = 'u8[65536]{0}', space=vmem, size = 0x10000, scoped, tag = 'input window, operand 3, single buffered']
    #allocation6 [shape = 's32[1]{0}', space=sflag, size = 0x4, scoped, tag = 'scoped memory for tpu_custom_call.1']
    #allocation7 [shape = 'u8[65536]{0}', space=vmem, size = 0x10000, scoped, tag = 'input window, operand 4, single buffered']
    #allocation8 [shape = 'u8[4096]{0}', space=vmem, size = 0x1000, scoped, tag = 'output window, operand 0, single buffered']
    %10 = vsyncpa [#allocation3], 0
    %11 = vsyncpa [#allocation6], 0
    %12 = vsyncpa [#allocation4], 0
    // Predicated region
    $region2: #{tpu_custom_call.1} parent=1 // pred_check
      _
    $region3: #{tpu_custom_call.1} parent=1 // pred_check_branch
      %14 = sbr.rel (0) target = $region5
    $region4: #{tpu_custom_call.1} parent=1 // pred_region
      _
    $region5: #{tpu_custom_call.1} parent=1 // pred_fallthru
      _
    // Predicated region
    $region6: #{tpu_custom_call.1} parent=1 // pred_check
      _
    $region7: #{tpu_custom_call.1} parent=1 // pred_check_branch
      %16 = sbr.rel (0) target = $region9
    $region8: #{tpu_custom_call.1} parent=1 // pred_region
      %s18 = ssub.s32 128, 128
      %19 = vsyncadd [#allocation3], %s18
      %s21 = sshll.u32 [#allocation2], 4
      %s22 = int_to_ptr.vmem [resolvable:$true] %s21
      %24 = dma.hbm_to_vmem [thread:$0]  %s1, 128, %s22, [#allocation3]
    $region9: #{tpu_custom_call.1} parent=1 // pred_fallthru
      _
    // Predicated region
    $region10: #{tpu_custom_call.1} parent=1 // pred_check
      _
    $region11: #{tpu_custom_call.1} parent=1 // pred_check_branch
      %26 = sbr.rel (0) target = $region13
    $region12: #{tpu_custom_call.1} parent=1 // pred_region
      _
    $region13: #{tpu_custom_call.1} parent=1 // pred_fallthru
      _
    // Predicated region
    $region14: #{tpu_custom_call.1} parent=1 // pred_check
      _
    $region15: #{tpu_custom_call.1} parent=1 // pred_check_branch
      %28 = sbr.rel (0) target = $region17
    $region16: #{tpu_custom_call.1} parent=1 // pred_region
      %s30 = ssub.s32 2048, 2048
      %31 = vsyncadd [#allocation6], %s30
      %s32 = sshll.u32 [#allocation5], 4
      %s33 = int_to_ptr.vmem [resolvable:$true] %s32
      %38 = dma.hbm_to_vmem [thread:$0]  %s3, 2048, %s33, [#allocation6], 128, 128, 8
    $region17: #{tpu_custom_call.1} parent=1 // pred_fallthru
      _
    // Predicated region
    $region18: #{tpu_custom_call.1} parent=1 // pred_check
      _
    $region19: #{tpu_custom_call.1} parent=1 // pred_check_branch
      %40 = sbr.rel (0) target = $region21
    $region20: #{tpu_custom_call.1} parent=1 // pred_region
      %s42 = ssub.s32 2048, 2048
      %43 = vsyncadd [#allocation6], %s42
      %s44 = sshll.u32 [#allocation7], 4
      %s45 = int_to_ptr.vmem [resolvable:$true] %s44
      %50 = dma.hbm_to_vmem [thread:$0]  %s4, 2048, %s45, [#allocation6], 64, 64, 4
    $region21: #{tpu_custom_call.1} parent=1 // pred_fallthru
      _
    // Predicated region
    $region22: #{tpu_custom_call.1} parent=1 // pred_check
      _
    $region23: #{tpu_custom_call.1} parent=1 // pred_check_branch
      %52 = sbr.rel (0) target = $region25
    $region24: #{tpu_custom_call.1} parent=1 // pred_region
      %53 = dma.done [#allocation3], 128
    $region25: #{tpu_custom_call.1} parent=1 // pred_fallthru
      _
    // Predicated region
    $region26: #{tpu_custom_call.1} parent=1 // pred_check
      _
    $region27: #{tpu_custom_call.1} parent=1 // pred_check_branch
      %55 = sbr.rel (0) target = $region29
    $region28: #{tpu_custom_call.1} parent=1 // pred_region
      %56 = dma.done [#allocation6], 2048
    $region29: #{tpu_custom_call.1} parent=1 // pred_fallthru
      _
    // Predicated region
    $region30: #{tpu_custom_call.1} parent=1 // pred_check
      _
    $region31: #{tpu_custom_call.1} parent=1 // pred_check_branch
      %58 = sbr.rel (0) target = $region33
    $region32: #{tpu_custom_call.1} parent=1 // pred_region
      %59 = dma.done [#allocation6], 2048
    $region33: #{tpu_custom_call.1} parent=1 // pred_fallthru
      _
    %v61 = vld [vmem:[#allocation2] sm:$0x1]
    %v62 = vld [vmem:[#allocation2 + $0x1] sm:$0x1]
    %v63 = vld [vmem:[#allocation2 + $0x2] sm:$0x1]
    %v64 = vld [vmem:[#allocation2 + $0x3] sm:$0x1]
    %v65 = vld [vmem:[#allocation2 + $0x4] sm:$0x1]
    %v66 = vld [vmem:[%s2] ss:$8 sm:$0x3]
    %s67 = scalar_lea.vmem %s2, 1
    %v68 = vld [vmem:[%s67] ss:$8 sm:$0x3]
    %s69 = scalar_lea.vmem %s2, 2
    %v70 = vld [vmem:[%s69] ss:$8 sm:$0x3]
    %v71 = vld [vmem:[%s0] sm:$0xff]
    %73 = vset.pattern.permute.xlu0 0
    %74 = vperm.xlu0 %73, %v71
    %v75 = vpop.permute.xlu0 %74
    %v77 = vlaneseq
    %v78 = vshrl.u32 %v77, 7
    %v79 = vsub.s32 0, %v78
    %v80 = vrot.slane %v61, %v79
    %v81 = vmul.f32 %v75, %v80
    %v82 = vlaneseq
    %v83 = vshrl.u32 %v82, 7
    %v84 = vsub.s32 0, %v83
    %v85 = vrot.slane %v62, %v84
    %v86 = vadd.f32 %v81, %v85
    %v87 = vand.u32 2147483647, %v86
    %vm88 = vcmp.le.f32.partialorder %v87, 0.7853982
    %vm89 = vcmp.lt.s32.totalorder %v86, 0
    %v90 = vand.u32 %v86, 2139095040
    %v91 = vshrl.u32 %v90, 23
    %v92 = vsub.s32 %v91, 127
    %v93 = vand.u32 2147483647, %v86
    %v94 = vand.u32 %v93, 8388607
    %v95 = vor.u32 %v94, 8388608
    %v96 = vsub.s32 0, %v95
    %v97 = vadd.s32 %v92, 1
    %vm98 = vcmp.gt.s32.totalorder %v97, 0
    %v99 = vsel %vm98, %v97, 0
    %v100 = vshrl.u32 %v99, 5
    %v101 = vand.u32 %v99, 31
    %v102 = vsub.s32 32, %v101
    %v103 = vshrl.u32 683565275, %v102
    %v104 = vshll.u32 683565275, %v101
    %v105 = vshrl.u32 2475754826, %v102
    %v106 = vor.u32 %v104, %v105
    %v107 = vshll.u32 2475754826, %v101
    %v108 = vshrl.u32 2131351028, %v102
    %v109 = vor.u32 %v107, %v108
    %v110 = vshll.u32 2131351028, %v101
    %v111 = vshrl.u32 2102212464, %v102
    %v112 = vor.u32 %v110, %v111
    %v113 = vshll.u32 2102212464, %v101
    %v114 = vshrl.u32 920167782, %v102
    %v115 = vor.u32 %v113, %v114
    %v116 = vshll.u32 920167782, %v101
    %v117 = vshrl.u32 1326507024, %v102
    %v118 = vor.u32 %v116, %v117
    %vm119 = vcmp.lt.s32.totalorder %v100, 1
    %vm120 = vcmp.lt.s32.totalorder %v100, 2
    %vm121 = vcmp.lt.s32.totalorder %v100, 3
    %vm122 = vcmp.lt.s32.totalorder %v100, 4
    %v123 = vsel %vm119, %v103, %v106
    %v124 = vsel %vm122, %v112, 2102212464
    %v125 = vsel %vm121, %v109, %v124
    %v126 = vsel %vm120, %v123, %v125
    %v127 = vsel %vm119, %v106, %v109
    %v128 = vsel %vm122, %v115, 920167782
    %v129 = vsel %vm121, %v112, %v128
    %v130 = vsel %vm120, %v127, %v129
    %v131 = vsel %vm119, %v109, %v112
    %v132 = vsel %vm122, %v118, 1326507024
    %v133 = vsel %vm121, %v115, %v132
    %v134 = vsel %vm120, %v131, %v133
    %v135 = vshll.u32 %v95, 8
    %v136 = vmul.u32.u64.compose %v135, %v134
    %v137 = vextract.low.u32 %v136
    %v138 = vextract.high.u32 %v136
    %v139 = vmul.u32.u64.compose %v135, %v130
    %v140 = vextract.low.u32 %v139
    %v141 = vextract.high.u32 %v139
    %v142 = vmul.u32 %v135, %v126
    %v143 = vadd.s32 %v138, %v140
    %vm144 = vc.u32 %v138, %v140
    %v145 = vadd.s32 %v141, 1
    %v146 = vsel %vm144, %v145, %v141
    %v147 = vadd.s32 %v142, %v146
    %v148 = vadd.s32 %v147, 536870912
    %v149 = vshrl.u32 %v148, 30
    %v150 = vshll.u32 %v149, 30
    %v151 = vsub.s32 %v147, %v150
    %vm152 = vcmp.lt.s32.totalorder %v151, 0
    %v153 = vsub.s32 0, %v151
    %v154 = vsel %vm152, %v153, %v151
    %v155 = vclz %v154
    %v156 = vsub.s32 %v155, 2
    %vm157 = vcmp.gt.s32.totalorder 0, %v156
    %v158 = vsel %vm157, 0, %v156
    %v159 = vsub.s32 32, %v158
    %v160 = vshll.u32 %v151, %v158
    %v161 = vshrl.u32 %v143, %v159
    %v162 = vor.u32 %v160, %v161
    %v163 = vsub.s32 4294967266, %v158
    %v164 = vadd.s32 %v163, 127
    %v165 = vshll.u32 %v164, 23
    %v166 = vor.u32 4788187, %v165
    %v167 = vand.u32 2147483647, %v166
    %v169 = vcvt.s32.f32 %v162
    %v170 = vmul.f32 %v169, %v167
    %v171 = vxor.u32 %v170, 2147483648
    %v172 = vsel %vm89, %v171, %v170
    %v173 = vsub.s32 4, %v149
    %v174 = vsel %vm89, %v173, %v149
    %v175 = vsel %vm88, %v86, %v172
    %v176 = vsel %vm88, 0, %v174
    %v177 = vcosq.f32.pop %v175
    %v178 = vsinq.f32.pop %v175
    %vm179 = vweird.f32 %v86
    %v180 = vadd.s32 %v176, 3
    %v181 = vand.u32 %v180, 3
    %vm182 = vcmp.lt.s32.totalorder %v181, 2
    %vm183 = vcmp.eq.s32.totalorder %v181, 0
    %v184 = vxor.u32 %v178, 2147483648
    %v185 = vsel %vm183, %v177, %v184
    %vm186 = vcmp.eq.s32.totalorder %v181, 2
    %v187 = vxor.u32 %v177, 2147483648
    %v188 = vsel %vm186, %v187, %v178
    %v189 = vsel %vm182, %v185, %v188
    %v190 = vsel %vm179, nan, %v189
    %v191 = vpack.c.bf16 %v190, %v190
    %v192 = vld [vmem:[#allocation5] sm:$0xff]
    %v193 = vld [vmem:[#allocation5 + $0x8] sm:$0xff]
    %v194 = vld [vmem:[#allocation5 + $0x10] sm:$0xff]
    %v195 = vld [vmem:[#allocation5 + $0x18] sm:$0xff]
    %v196 = vld [vmem:[#allocation5 + $0x20] sm:$0xff]
    %v197 = vld [vmem:[#allocation5 + $0x28] sm:$0xff]
    %v198 = vld [vmem:[#allocation5 + $0x30] sm:$0xff]
    %v199 = vld [vmem:[#allocation5 + $0x38] sm:$0xff]
    %v200 = vld [vmem:[#allocation5 + $0x40] sm:$0xff]
    %v201 = vld [vmem:[#allocation5 + $0x48] sm:$0xff]
    %v202 = vld [vmem:[#allocation5 + $0x50] sm:$0xff]
    %v203 = vld [vmem:[#allocation5 + $0x58] sm:$0xff]
    %v204 = vld [vmem:[#allocation5 + $0x60] sm:$0xff]
    %v205 = vld [vmem:[#allocation5 + $0x68] sm:$0xff]
    %v206 = vld [vmem:[#allocation5 + $0x70] sm:$0xff]
    %v207 = vld [vmem:[#allocation5 + $0x78] sm:$0xff]
    %v209 = vlaneseq
    %v210 = vshrl.u32 %v209, 7
    %v211 = vsub.s32 0, %v210
    %v212 = vrot.slane %v66, %v211
    %v213 = vlaneseq
    %v214 = vshrl.u32 %v213, 7
    %v215 = vsub.s32 1, %v214
    %v216 = vrot.slane %v66, %v215
    %v235 = vunpack.c.l.b16 %v192
    %v236 = vunpack.c.h.b16 %v192
    %v237 = vunpack.c.l.b16 %v193
    %v238 = vunpack.c.h.b16 %v193
    %v239 = vunpack.c.l.b16 %v194
    %v240 = vunpack.c.h.b16 %v194
    %v241 = vunpack.c.l.b16 %v195
    %v242 = vunpack.c.h.b16 %v195
    %v243 = vunpack.c.l.b16 %v196
    %v244 = vunpack.c.h.b16 %v196
    %v245 = vunpack.c.l.b16 %v197
    %v246 = vunpack.c.h.b16 %v197
    %v247 = vunpack.c.l.b16 %v198
    %v248 = vunpack.c.h.b16 %v198
    %v249 = vunpack.c.l.b16 %v199
    %v250 = vunpack.c.h.b16 %v199
    %v251 = vunpack.c.l.b16 %v200
    %v252 = vunpack.c.h.b16 %v200
    %v253 = vunpack.c.l.b16 %v201
    %v254 = vunpack.c.h.b16 %v201
    %v255 = vunpack.c.l.b16 %v202
    %v256 = vunpack.c.h.b16 %v202
    %v257 = vunpack.c.l.b16 %v203
    %v258 = vunpack.c.h.b16 %v203
    %v259 = vunpack.c.l.b16 %v204
    %v260 = vunpack.c.h.b16 %v204
    %v261 = vunpack.c.l.b16 %v205
    %v262 = vunpack.c.h.b16 %v205
    %v263 = vunpack.c.l.b16 %v206
    %v264 = vunpack.c.h.b16 %v206
    %v265 = vunpack.c.l.b16 %v207
    %v266 = vunpack.c.h.b16 %v207
    %v267 = vpack.c.b16 %v237, %v235
    %v268 = vpack.c.b16 %v238, %v236
    %v269 = vpack.c.b16 %v241, %v239
    %v270 = vpack.c.b16 %v242, %v240
    %v271 = vpack.c.b16 %v245, %v243
    %v272 = vpack.c.b16 %v246, %v244
    %v273 = vpack.c.b16 %v249, %v247
    %v274 = vpack.c.b16 %v250, %v248
    %v275 = vpack.c.b16 %v253, %v251
    %v276 = vpack.c.b16 %v254, %v252
    %v277 = vpack.c.b16 %v257, %v255
    %v278 = vpack.c.b16 %v258, %v256
    %v279 = vpack.c.b16 %v261, %v259
    %v280 = vpack.c.b16 %v262, %v260
    %v281 = vpack.c.b16 %v265, %v263
    %v282 = vpack.c.b16 %v266, %v264
    %299 = vmatprep.subr.bf16.mxu0 %v268
    %300 = vmatpush1.bf16.msra.mxu0 %v267
    %301 = vmatprep.subr.bf16.mxu0 %v270
    %302 = vmatpush1.bf16.msra.mxu0 %v269
    %303 = vmatprep.subr.bf16.mxu0 %v272
    %304 = vmatpush1.bf16.msra.mxu0 %v271
    %305 = vmatprep.subr.bf16.mxu0 %v274
    %306 = vmatpush1.bf16.msra.mxu0 %v273
    %307 = vmatprep.subr.bf16.mxu0 %v276
    %308 = vmatpush1.bf16.msra.mxu0 %v275
    %309 = vmatprep.subr.bf16.mxu0 %v278
    %310 = vmatpush1.bf16.msra.mxu0 %v277
    %311 = vmatprep.subr.bf16.mxu0 %v280
    %312 = vmatpush1.bf16.msra.mxu0 %v279
    %313 = vmatprep.subr.bf16.mxu0 %v282
    %314 = vmatpush1.bf16.msra.mxu0 %v281
    %315 = vmatprep.subr.bf16.mxu0 0
    %316 = vmatpush1.bf16.msra.mxu0 0
    %317 = vmatprep.subr.bf16.mxu0 0
    %318 = vmatpush1.bf16.msra.mxu0 0
    %319 = vmatprep.subr.bf16.mxu0 0
    %320 = vmatpush1.bf16.msra.mxu0 0
    %321 = vmatprep.subr.bf16.mxu0 0
    %322 = vmatpush1.bf16.msra.mxu0 0
    %323 = vmatprep.subr.bf16.mxu0 0
    %324 = vmatpush1.bf16.msra.mxu0 0
    %325 = vmatprep.subr.bf16.mxu0 0
    %326 = vmatpush1.bf16.msra.mxu0 0
    %327 = vmatprep.subr.bf16.mxu0 0
    %328 = vmatpush1.bf16.msra.mxu0 0
    %329 = vmatprep.subr.bf16.mxu0 0
    %330 = vmatpush1.bf16.msra.mxu0 0
    %331 = vmatprep.mubr.bf16.mxu0 0
    %332 = vmatmul.mubr.bf16.gmra.mrb[0].mxu0 %v191
    %v333 = vpop.f32.mrb[0].mxu0
    %v334 = vadd.f32 %v212, %v333
    %v335 = vpop.f32.mrb[0].mxu0
    %v336 = vadd.f32 %v216, %v335
    %v337 = vpop.f32.mrb[0].mxu0
    %v338 = vpop.f32.mrb[0].mxu0
    %339 = vdwg.mxu0
    %v340 = vadd.f32 %v334, %v336
    %341 = vadd.xlane.f32.xlu0 %v340
    %v342 = vpop.xlane.xlu0 %341
    %v343 = vrcp.pop 256.0
    %v344 = vmul.f32 %v342, %v343
    %v345 = vmul.f32 %v334, %v334
    %v346 = vmul.f32 %v336, %v336
    %v347 = vadd.f32 %v345, %v346
    %348 = vadd.xlane.f32.xlu0 %v347
    %v349 = vpop.xlane.xlu0 %348
    %v350 = vmul.f32 %v349, %v343
    %v351 = vmul.f32 %v344, %v344
    %v352 = vsub.f32 %v350, %v351
    %v353 = vmax.f32 %v352, 0.0
    %v354 = vsub.f32 %v334, %v344
    %v355 = vsub.f32 %v336, %v344
    %v356 = vadd.f32 %v353, 1e-05
    %v357 = vrsqrt.pop %v356
    %v358 = vmul.f32 %v354, %v357
    %v359 = vmul.f32 %v355, %v357
    %v361 = vlaneseq
    %v362 = vshrl.u32 %v361, 7
    %v363 = vsub.s32 0, %v362
    %v364 = vrot.slane %v68, %v363
    %v365 = vlaneseq
    %v366 = vshrl.u32 %v365, 7
    %v367 = vsub.s32 1, %v366
    %v368 = vrot.slane %v68, %v367
    %v371 = vmul.f32 %v358, %v364
    %v372 = vmul.f32 %v359, %v368
    %v374 = vlaneseq
    %v375 = vshrl.u32 %v374, 7
    %v376 = vsub.s32 0, %v375
    %v377 = vrot.slane %v70, %v376
    %v378 = vlaneseq
    %v379 = vshrl.u32 %v378, 7
    %v380 = vsub.s32 1, %v379
    %v381 = vrot.slane %v70, %v380
    %v384 = vadd.f32 %v371, %v377
    %v385 = vadd.f32 %v372, %v381
    %v386 = vmul.f32 %v384, 0.5
    %v387 = vmul.f32 %v385, 0.5
    %v388 = vtanh.pop %v386
    %v389 = vtanh.pop %v387
    %v390 = vadd.f32 %v388, 1.0
    %v391 = vadd.f32 %v389, 1.0
    %v392 = vmul.f32 %v386, %v390
    %v393 = vmul.f32 %v387, %v391
    %v394 = vpack.c.bf16 %v392, %v392
    %v395 = vpack.c.bf16 %v393, %v393
    %v396 = vld [vmem:[#allocation7] sm:$0xf]
    %v397 = vld [vmem:[#allocation7 + $0x4] sm:$0xf]
    %v398 = vld [vmem:[#allocation7 + $0x8] sm:$0xf]
    %v399 = vld [vmem:[#allocation7 + $0xc] sm:$0xf]
    %v400 = vld [vmem:[#allocation7 + $0x10] sm:$0xf]
    %v401 = vld [vmem:[#allocation7 + $0x14] sm:$0xf]
    %v402 = vld [vmem:[#allocation7 + $0x18] sm:$0xf]
    %v403 = vld [vmem:[#allocation7 + $0x1c] sm:$0xf]
    %v404 = vld [vmem:[#allocation7 + $0x20] sm:$0xf]
    %v405 = vld [vmem:[#allocation7 + $0x24] sm:$0xf]
    %v406 = vld [vmem:[#allocation7 + $0x28] sm:$0xf]
    %v407 = vld [vmem:[#allocation7 + $0x2c] sm:$0xf]
    %v408 = vld [vmem:[#allocation7 + $0x30] sm:$0xf]
    %v409 = vld [vmem:[#allocation7 + $0x34] sm:$0xf]
    %v410 = vld [vmem:[#allocation7 + $0x38] sm:$0xf]
    %v411 = vld [vmem:[#allocation7 + $0x3c] sm:$0xf]
    %v412 = vld [vmem:[#allocation7 + $0x40] sm:$0xf]
    %v413 = vld [vmem:[#allocation7 + $0x44] sm:$0xf]
    %v414 = vld [vmem:[#allocation7 + $0x48] sm:$0xf]
    %v415 = vld [vmem:[#allocation7 + $0x4c] sm:$0xf]
    %v416 = vld [vmem:[#allocation7 + $0x50] sm:$0xf]
    %v417 = vld [vmem:[#allocation7 + $0x54] sm:$0xf]
    %v418 = vld [vmem:[#allocation7 + $0x58] sm:$0xf]
    %v419 = vld [vmem:[#allocation7 + $0x5c] sm:$0xf]
    %v420 = vld [vmem:[#allocation7 + $0x60] sm:$0xf]
    %v421 = vld [vmem:[#allocation7 + $0x64] sm:$0xf]
    %v422 = vld [vmem:[#allocation7 + $0x68] sm:$0xf]
    %v423 = vld [vmem:[#allocation7 + $0x6c] sm:$0xf]
    %v424 = vld [vmem:[#allocation7 + $0x70] sm:$0xf]
    %v425 = vld [vmem:[#allocation7 + $0x74] sm:$0xf]
    %v426 = vld [vmem:[#allocation7 + $0x78] sm:$0xf]
    %v427 = vld [vmem:[#allocation7 + $0x7c] sm:$0xf]
    %v428 = vlaneseq
    %v429 = vshrl.u32 %v428, 7
    %v430 = vsub.s32 0, %v429
    %v431 = vrot.slane %v63, %v430
    %v464 = vunpack.c.l.b16 %v396
    %v465 = vunpack.c.l.b16 %v397
    %v466 = vunpack.c.l.b16 %v398
    %v467 = vunpack.c.l.b16 %v399
    %v468 = vunpack.c.l.b16 %v400
    %v469 = vunpack.c.l.b16 %v401
    %v470 = vunpack.c.l.b16 %v402
    %v471 = vunpack.c.l.b16 %v403
    %v472 = vunpack.c.l.b16 %v404
    %v473 = vunpack.c.l.b16 %v405
    %v474 = vunpack.c.l.b16 %v406
    %v475 = vunpack.c.l.b16 %v407
    %v476 = vunpack.c.l.b16 %v408
    %v477 = vunpack.c.l.b16 %v409
    %v478 = vunpack.c.l.b16 %v410
    %v479 = vunpack.c.l.b16 %v411
    %v480 = vunpack.c.l.b16 %v412
    %v481 = vunpack.c.l.b16 %v413
    %v482 = vunpack.c.l.b16 %v414
    %v483 = vunpack.c.l.b16 %v415
    %v484 = vunpack.c.l.b16 %v416
    %v485 = vunpack.c.l.b16 %v417
    %v486 = vunpack.c.l.b16 %v418
    %v487 = vunpack.c.l.b16 %v419
    %v488 = vunpack.c.l.b16 %v420
    %v489 = vunpack.c.l.b16 %v421
    %v490 = vunpack.c.l.b16 %v422
    %v491 = vunpack.c.l.b16 %v423
    %v492 = vunpack.c.l.b16 %v424
    %v493 = vunpack.c.l.b16 %v425
    %v494 = vunpack.c.l.b16 %v426
    %v495 = vunpack.c.l.b16 %v427
    %v496 = vpack.c.b16 %v465, %v464
    %v497 = vpack.c.b16 %v467, %v466
    %v498 = vpack.c.b16 %v469, %v468
    %v499 = vpack.c.b16 %v471, %v470
    %v500 = vpack.c.b16 %v473, %v472
    %v501 = vpack.c.b16 %v475, %v474
    %v502 = vpack.c.b16 %v477, %v476
    %v503 = vpack.c.b16 %v479, %v478
    %v504 = vpack.c.b16 %v481, %v480
    %v505 = vpack.c.b16 %v483, %v482
    %v506 = vpack.c.b16 %v485, %v484
    %v507 = vpack.c.b16 %v487, %v486
    %v508 = vpack.c.b16 %v489, %v488
    %v509 = vpack.c.b16 %v491, %v490
    %v510 = vpack.c.b16 %v493, %v492
    %v511 = vpack.c.b16 %v495, %v494
    %528 = vmatprep.subr.bf16.mxu0 0
    %529 = vmatpush1.bf16.msra.mxu0 %v496
    %530 = vmatprep.subr.bf16.mxu0 0
    %531 = vmatpush1.bf16.msra.mxu0 %v497
    %532 = vmatprep.subr.bf16.mxu0 0
    %533 = vmatpush1.bf16.msra.mxu0 %v498
    %534 = vmatprep.subr.bf16.mxu0 0
    %535 = vmatpush1.bf16.msra.mxu0 %v499
    %536 = vmatprep.subr.bf16.mxu0 0
    %537 = vmatpush1.bf16.msra.mxu0 %v500
    %538 = vmatprep.subr.bf16.mxu0 0
    %539 = vmatpush1.bf16.msra.mxu0 %v501
    %540 = vmatprep.subr.bf16.mxu0 0
    %541 = vmatpush1.bf16.msra.mxu0 %v502
    %542 = vmatprep.subr.bf16.mxu0 0
    %543 = vmatpush1.bf16.msra.mxu0 %v503
    %544 = vmatprep.subr.bf16.mxu0 0
    %545 = vmatpush1.bf16.msra.mxu0 %v504
    %546 = vmatprep.subr.bf16.mxu0 0
    %547 = vmatpush1.bf16.msra.mxu0 %v505
    %548 = vmatprep.subr.bf16.mxu0 0
    %549 = vmatpush1.bf16.msra.mxu0 %v506
    %550 = vmatprep.subr.bf16.mxu0 0
    %551 = vmatpush1.bf16.msra.mxu0 %v507
    %552 = vmatprep.subr.bf16.mxu0 0
    %553 = vmatpush1.bf16.msra.mxu0 %v508
    %554 = vmatprep.subr.bf16.mxu0 0
    %555 = vmatpush1.bf16.msra.mxu0 %v509
    %556 = vmatprep.subr.bf16.mxu0 0
    %557 = vmatpush1.bf16.msra.mxu0 %v510
    %558 = vmatprep.subr.bf16.mxu0 0
    %559 = vmatpush1.bf16.msra.mxu0 %v511
    %560 = vmatprep.mubr.bf16.mxu0 %v395
    %561 = vmatmul.mubr.bf16.gmra.mrb[0].mxu0 %v394
    %v562 = vpop.f32.mrb[0].mxu0
    %v563 = vadd.f32 %v431, %v562
    %v564 = vpop.f32.mrb[0].mxu0
    %v565 = vpop.f32.mrb[0].mxu0
    %v566 = vpop.f32.mrb[0].mxu0
    %567 = vdwg.mxu0
    %568 = vadd.xlane.f32.xlu0 %v563
    %v569 = vpop.xlane.xlu0 %568
    %v570 = vrcp.pop 128.0
    %v571 = vmul.f32 %v569, %v570
    %v572 = vmul.f32 %v563, %v563
    %573 = vadd.xlane.f32.xlu0 %v572
    %v574 = vpop.xlane.xlu0 %573
    %v575 = vmul.f32 %v574, %v570
    %v576 = vmul.f32 %v571, %v571
    %v577 = vsub.f32 %v575, %v576
    %v578 = vmax.f32 %v577, 0.0
    %v579 = vsub.f32 %v563, %v571
    %v580 = vadd.f32 %v578, 1e-05
    %v581 = vrsqrt.pop %v580
    %v582 = vmul.f32 %v579, %v581
    %v583 = vlaneseq
    %v584 = vshrl.u32 %v583, 7
    %v585 = vsub.s32 0, %v584
    %v586 = vrot.slane %v64, %v585
    %v587 = vmul.f32 %v582, %v586
    %v588 = vlaneseq
    %v589 = vshrl.u32 %v588, 7
    %v590 = vsub.s32 0, %v589
    %v591 = vrot.slane %v65, %v590
    %v592 = vadd.f32 %v587, %v591
    %v593 = vmul.f32 %v592, 0.5
    %v594 = vtanh.pop %v593
    %v595 = vadd.f32 %v594, 1.0
    %v596 = vmul.f32 %v593, %v595
    %597 = vst [vmem:[#allocation8] sm:$0xff] %v596
    // Predicated region
    $region34: #{tpu_custom_call.1} parent=1 // pred_check
      _
    $region35: #{tpu_custom_call.1} parent=1 // pred_check_branch
      %599 = sbr.rel (0) target = $region37
    $region36: #{tpu_custom_call.1} parent=1 // pred_region
      %s601 = ssub.s32 128, 128
      %602 = vsyncadd [#allocation4], %s601
      %s604 = sshll.u32 [#allocation8], 4
      %s605 = int_to_ptr.vmem [resolvable:$true] %s604
      %607 = dma.vmem_to_hbm [thread:$0]  %s605, 128, %s5, [#allocation4]
    $region37: #{tpu_custom_call.1} parent=1 // pred_fallthru
      _
    // Predicated region
    $region38: #{tpu_custom_call.1} parent=1 // pred_check
      _
    $region39: #{tpu_custom_call.1} parent=1 // pred_check_branch
      %609 = sbr.rel (0) target = $region41
    $region40: #{tpu_custom_call.1} parent=1 // pred_region
      %610 = dma.done [#allocation4], 128
    $region41: #{tpu_custom_call.1} parent=1 // pred_fallthru
      _
    %611 = vsyncpa [#allocation3], 1
    %612 = vsyncpa [#allocation6], 1
    %613 = vsyncpa [#allocation4], 1

</llo_original>
